<compile_context>
chip_gen: v6e
topology: v6e:2x2x1
jax: 0.10.0
libtpu: 0.0.40
codegen_flags: <defaults>
</compile_context>

<pallas_src>
import functools

import jax
import jax.numpy as jnp
from jax.experimental import pallas as pl
from jax.experimental.pallas import tpu as pltpu

# TODO(synk): tokenize() / text_encoder() / kmeans() (string-input path and
# cluster_centers construction from descriptions) have no Pallas equivalent;
# cluster_centers are passed in directly instead.


def _round_up(x: int, m: int) -> int:
    return (x + m - 1) // m * m


def _tse_kernel(tc_ref, cent_ref, out_ref, *, topk: int, lambda_: float):
    tc = tc_ref[...].astype(jnp.float32)        # [TB, Dp]
    cent = cent_ref[...].astype(jnp.float32)    # [K, Dp]

    # sims[b, k] = <tc[b], centers[k]>: contract dim 1 of both operands so the
    # MXU does the rhs-transposed contraction natively (no XLU transpose).
    sims = jax.lax.dot_general(
        tc, cent, dimension_numbers=(((1,), (1,)), ((), ())),
        preferred_element_type=jnp.float32)     # [TB, K]
    tb, k_dim = sims.shape

    lane = jax.lax.broadcasted_iota(jnp.int32, (tb, k_dim), 1)
    neg_inf = jnp.float32(-jnp.inf)

    # Streaming top-k: accumulate only the selection mask (union of one-hots)
    # and the iteration-0 row max (softmax shift).  topk is small & static ->
    # Python-unrolled.  Compiler masks padded lanes >= K in the reductions.
    work = sims
    sel = jnp.zeros((tb, k_dim), dtype=jnp.bool_)
    mx0 = None
    for j in range(topk):
        mx = jnp.max(work, axis=-1, keepdims=True)                      # [TB,1]
        if j == 0:
            mx0 = mx                                                    # exact row max
        is_max = work == mx
        first = jnp.min(jnp.where(is_max, lane, k_dim),
                        axis=-1, keepdims=True)                         # lowest index (matches top_k)
        oh = lane == first                                              # [TB,K]
        sel = jnp.logical_or(sel, oh)
        work = jnp.where(oh, neg_inf, work)

    # Softmax over the selected similarities: one full-tile exp (same EUP vreg
    # cost as a single [TB,1] column exp) + one lane-sum for the denominator.
    e = jnp.where(sel, jnp.exp(sims - mx0), 0.0)                        # [TB,K]
    denom = jnp.sum(e, axis=-1, keepdims=True)                          # [TB,1], >= 1
    r = pl.reciprocal(denom, approx=True)
    r = r * (2.0 - denom * r)                                           # one Newton step (~1e-6 rel)

    # Tc = lambda * (e @ centers) / denom ; out = Tc + tc
    num = jnp.dot(e, cent, preferred_element_type=jnp.float32)          # [TB,Dp]
    out_ref[...] = ((lambda_ * r) * num + tc).astype(out_ref.dtype)


def text_semantic_enrichment(tc, cluster_centers, *, topk: int, lambda_: float,
                             batch_tile: int = 128):
    """Pallas implementation of TextSemanticEnrichment.forward (tensor path)."""
    assert tc.ndim == 2, "x must be a 2D tensor: [batch, feature_dim]"
    B, D = tc.shape
    K, D2 = cluster_centers.shape
    assert D == D2

    # Pad the feature dim to a multiple of 128: lane-dense (unmasked) stores
    # and full MXU width.  Zero padding changes neither sims nor Tc.
    Dp = _round_up(D, 128)
    tc_p = tc if Dp == D else jnp.pad(tc, ((0, 0), (0, Dp - D)))
    cent_p = (cluster_centers if Dp == D
              else jnp.pad(cluster_centers, ((0, 0), (0, Dp - D))))

    # Batch tile: as large as requested but never larger than the (8-rounded)
    # batch; pad the batch so the grid divides evenly.  Padded rows are zeros
    # (finite everywhere) and are sliced off below.
    tb = _round_up(min(batch_tile, _round_up(B, 8)), 8)
    Bp = _round_up(B, tb)
    if Bp != B:
        tc_p = jnp.pad(tc_p, ((0, Bp - B), (0, 0)))

    kernel = functools.partial(_tse_kernel, topk=topk, lambda_=lambda_)

    out = pl.pallas_call(
        kernel,
        out_shape=jax.ShapeDtypeStruct((Bp, Dp), tc.dtype),
        grid_spec=pltpu.PrefetchScalarGridSpec(
            num_scalar_prefetch=0,
            grid=(Bp // tb,),
            in_specs=[
                pl.BlockSpec((tb, Dp), lambda i: (i, 0)),   # tc tile
                pl.BlockSpec((K, Dp), lambda i: (0, 0)),    # full centers, resident
            ],
            out_specs=pl.BlockSpec((tb, Dp), lambda i: (i, 0)),
        ),
        compiler_params=pltpu.CompilerParams(
            dimension_semantics=("parallel",)),
    )(tc_p, cent_p)

    return out[:B, :D]


def _reference(tc, centers, topk, lambda_):
    """Pure-JAX reference mirroring the PyTorch forward."""
    sims = tc @ centers.T                                    # [B, K]
    _, top_idx = jax.lax.top_k(sims, topk)                   # [B, k]
    Ac = centers[top_idx]                                    # [B, k, D]
    scores = jax.nn.softmax(jnp.einsum('ijk,ik->ij', Ac, tc), axis=-1)
    Tc = lambda_ * (scores[..., None] * Ac).sum(axis=1)
    return Tc + tc


if __name__ == "__main__":
    TOPK = 5
    LAMBDA = 0.5
    key = jax.random.PRNGKey(0)

    # Case 1: module-default K=112 at toy size (single grid step, D padded 64->128).
    B, D, K = 8, 64, 112
    k1, k2, key = jax.random.split(key, 3)
    tc = jax.random.normal(k1, (B, D), dtype=jnp.float32)
    cluster_centers = jax.random.normal(k2, (K, D), dtype=jnp.float32)
    out = jax.block_until_ready(
        text_semantic_enrichment(tc, cluster_centers, topk=TOPK, lambda_=LAMBDA))
    ref = _reference(tc, cluster_centers, TOPK, LAMBDA)
    assert out.shape == (B, D)
    assert jnp.allclose(out, ref, atol=1e-4, rtol=1e-4), "case1 mismatch vs reference"

    # Case 2: exercises multi-step grid, batch padding (44 -> 48) and D padding (192 -> 256).
    B2, D2, K2 = 44, 192, 112
    k3, k4, key = jax.random.split(key, 3)
    tc2 = jax.random.normal(k3, (B2, D2), dtype=jnp.float32)
    cent2 = jax.random.normal(k4, (K2, D2), dtype=jnp.float32)
    out2 = jax.block_until_ready(
        text_semantic_enrichment(tc2, cent2, topk=TOPK, lambda_=LAMBDA, batch_tile=16))
    ref2 = _reference(tc2, cent2, TOPK, LAMBDA)
    assert out2.shape == (B2, D2)
    assert jnp.allclose(out2, ref2, atol=1e-4, rtol=1e-4), "case2 mismatch vs reference"

    print("KERNEL_OK")
</pallas_src>

<mosaic_0001>
module attributes {stable_mosaic.version = 11 : i64} {
  func.func @_tse_kernel(%arg0: i32, %arg1: memref<8x128xf32, #tpu.memory_space<vmem>>, %arg2: memref<112x128xf32, #tpu.memory_space<vmem>>, %arg3: memref<8x128xf32, #tpu.memory_space<vmem>>) attributes {dimension_semantics = [#tpu.dimension_semantics<parallel>], iteration_bounds = array<i64: 1>, scalar_prefetch = 0 : i64, scratch_operands = 0 : i64, tpu.core_type = #tpu.core_type<tc>, window_params = [{transform_indices = @transform_0, window_bounds = array<i64: 8, 128>}, {pipeline_mode = #tpu.pipeline_mode<synchronous>, transform_indices = @transform_1, window_bounds = array<i64: 112, 128>}, {transform_indices = @transform_2, window_bounds = array<i64: 8, 128>}]} {
    %c0 = arith.constant 0 : index
    %c0_0 = arith.constant 0 : index
    %0 = vector.load %arg1[%c0, %c0_0] : memref<8x128xf32, #tpu.memory_space<vmem>>, vector<8x128xf32>
    %c0_1 = arith.constant 0 : index
    %c0_2 = arith.constant 0 : index
    %1 = vector.load %arg2[%c0_1, %c0_2] : memref<112x128xf32, #tpu.memory_space<vmem>>, vector<112x128xf32>
    %cst = arith.constant dense<0.000000e+00> : vector<8x112xf32>
    %2 = tpu.matmul %0, %1, %cst {dimension_numbers = #tpu.dot_dimension_numbers<[1], [1], [0], [0], [0, 0, 1, 0], [], []>} : vector<8x128xf32>, vector<112x128xf32>, vector<8x112xf32> -> vector<8x112xf32>
    %3 = tpu.iota {dimensions = array<i32: 1>} : vector<8x112xi32>
    %false = arith.constant false
    %4 = vector.broadcast %false : i1 to vector<8x112xi1>
    %cst_3 = arith.constant dense<0xFF800000> : vector<8xf32>
    %5 = vector.multi_reduction <maximumf>, %2, %cst_3 [1] : vector<8x112xf32> to vector<8xf32>
    %6 = vector.shape_cast %5 : vector<8xf32> to vector<8x1xf32>
    %7 = vector.broadcast %6 : vector<8x1xf32> to vector<8x112xf32>
    %8 = arith.cmpf oeq, %2, %7 : vector<8x112xf32>
    %c112_i32 = arith.constant 112 : i32
    %9 = vector.broadcast %c112_i32 : i32 to vector<8x112xi32>
    %10 = arith.select %8, %3, %9 : vector<8x112xi1>, vector<8x112xi32>
    %cst_4 = arith.constant dense<2147483647> : vector<8xi32>
    %11 = vector.multi_reduction <minsi>, %10, %cst_4 [1] : vector<8x112xi32> to vector<8xi32>
    %12 = vector.shape_cast %11 : vector<8xi32> to vector<8x1xi32>
    %13 = vector.broadcast %12 : vector<8x1xi32> to vector<8x112xi32>
    %14 = arith.cmpi eq, %3, %13 : vector<8x112xi32>
    %15 = arith.ori %4, %14 : vector<8x112xi1>
    %cst_5 = arith.constant 0xFF800000 : f32
    %16 = vector.broadcast %cst_5 : f32 to vector<8x112xf32>
    %17 = arith.select %14, %16, %2 : vector<8x112xi1>, vector<8x112xf32>
    %cst_6 = arith.constant dense<0xFF800000> : vector<8xf32>
    %18 = vector.multi_reduction <maximumf>, %17, %cst_6 [1] : vector<8x112xf32> to vector<8xf32>
    %19 = vector.shape_cast %18 : vector<8xf32> to vector<8x1xf32>
    %20 = vector.broadcast %19 : vector<8x1xf32> to vector<8x112xf32>
    %21 = arith.cmpf oeq, %17, %20 : vector<8x112xf32>
    %c112_i32_7 = arith.constant 112 : i32
    %22 = vector.broadcast %c112_i32_7 : i32 to vector<8x112xi32>
    %23 = arith.select %21, %3, %22 : vector<8x112xi1>, vector<8x112xi32>
    %cst_8 = arith.constant dense<2147483647> : vector<8xi32>
    %24 = vector.multi_reduction <minsi>, %23, %cst_8 [1] : vector<8x112xi32> to vector<8xi32>
    %25 = vector.shape_cast %24 : vector<8xi32> to vector<8x1xi32>
    %26 = vector.broadcast %25 : vector<8x1xi32> to vector<8x112xi32>
    %27 = arith.cmpi eq, %3, %26 : vector<8x112xi32>
    %28 = arith.ori %15, %27 : vector<8x112xi1>
    %cst_9 = arith.constant 0xFF800000 : f32
    %29 = vector.broadcast %cst_9 : f32 to vector<8x112xf32>
    %30 = arith.select %27, %29, %17 : vector<8x112xi1>, vector<8x112xf32>
    %cst_10 = arith.constant dense<0xFF800000> : vector<8xf32>
    %31 = vector.multi_reduction <maximumf>, %30, %cst_10 [1] : vector<8x112xf32> to vector<8xf32>
    %32 = vector.shape_cast %31 : vector<8xf32> to vector<8x1xf32>
    %33 = vector.broadcast %32 : vector<8x1xf32> to vector<8x112xf32>
    %34 = arith.cmpf oeq, %30, %33 : vector<8x112xf32>
    %c112_i32_11 = arith.constant 112 : i32
    %35 = vector.broadcast %c112_i32_11 : i32 to vector<8x112xi32>
    %36 = arith.select %34, %3, %35 : vector<8x112xi1>, vector<8x112xi32>
    %cst_12 = arith.constant dense<2147483647> : vector<8xi32>
    %37 = vector.multi_reduction <minsi>, %36, %cst_12 [1] : vector<8x112xi32> to vector<8xi32>
    %38 = vector.shape_cast %37 : vector<8xi32> to vector<8x1xi32>
    %39 = vector.broadcast %38 : vector<8x1xi32> to vector<8x112xi32>
    %40 = arith.cmpi eq, %3, %39 : vector<8x112xi32>
    %41 = arith.ori %28, %40 : vector<8x112xi1>
    %cst_13 = arith.constant 0xFF800000 : f32
    %42 = vector.broadcast %cst_13 : f32 to vector<8x112xf32>
    %43 = arith.select %40, %42, %30 : vector<8x112xi1>, vector<8x112xf32>
    %cst_14 = arith.constant dense<0xFF800000> : vector<8xf32>
    %44 = vector.multi_reduction <maximumf>, %43, %cst_14 [1] : vector<8x112xf32> to vector<8xf32>
    %45 = vector.shape_cast %44 : vector<8xf32> to vector<8x1xf32>
    %46 = vector.broadcast %45 : vector<8x1xf32> to vector<8x112xf32>
    %47 = arith.cmpf oeq, %43, %46 : vector<8x112xf32>
    %c112_i32_15 = arith.constant 112 : i32
    %48 = vector.broadcast %c112_i32_15 : i32 to vector<8x112xi32>
    %49 = arith.select %47, %3, %48 : vector<8x112xi1>, vector<8x112xi32>
    %cst_16 = arith.constant dense<2147483647> : vector<8xi32>
    %50 = vector.multi_reduction <minsi>, %49, %cst_16 [1] : vector<8x112xi32> to vector<8xi32>
    %51 = vector.shape_cast %50 : vector<8xi32> to vector<8x1xi32>
    %52 = vector.broadcast %51 : vector<8x1xi32> to vector<8x112xi32>
    %53 = arith.cmpi eq, %3, %52 : vector<8x112xi32>
    %54 = arith.ori %41, %53 : vector<8x112xi1>
    %cst_17 = arith.constant 0xFF800000 : f32
    %55 = vector.broadcast %cst_17 : f32 to vector<8x112xf32>
    %56 = arith.select %53, %55, %43 : vector<8x112xi1>, vector<8x112xf32>
    %cst_18 = arith.constant dense<0xFF800000> : vector<8xf32>
    %57 = vector.multi_reduction <maximumf>, %56, %cst_18 [1] : vector<8x112xf32> to vector<8xf32>
    %58 = vector.shape_cast %57 : vector<8xf32> to vector<8x1xf32>
    %59 = vector.broadcast %58 : vector<8x1xf32> to vector<8x112xf32>
    %60 = arith.cmpf oeq, %56, %59 : vector<8x112xf32>
    %c112_i32_19 = arith.constant 112 : i32
    %61 = vector.broadcast %c112_i32_19 : i32 to vector<8x112xi32>
    %62 = arith.select %60, %3, %61 : vector<8x112xi1>, vector<8x112xi32>
    %cst_20 = arith.constant dense<2147483647> : vector<8xi32>
    %63 = vector.multi_reduction <minsi>, %62, %cst_20 [1] : vector<8x112xi32> to vector<8xi32>
    %64 = vector.shape_cast %63 : vector<8xi32> to vector<8x1xi32>
    %65 = vector.broadcast %64 : vector<8x1xi32> to vector<8x112xi32>
    %66 = arith.cmpi eq, %3, %65 : vector<8x112xi32>
    %67 = arith.ori %54, %66 : vector<8x112xi1>
    %68 = vector.broadcast %6 : vector<8x1xf32> to vector<8x112xf32>
    %69 = arith.subf %2, %68 : vector<8x112xf32>
    %70 = math.exp %69 : vector<8x112xf32>
    %cst_21 = arith.constant 0.000000e+00 : f32
    %71 = vector.broadcast %cst_21 : f32 to vector<8x112xf32>
    %72 = arith.select %67, %70, %71 : vector<8x112xi1>, vector<8x112xf32>
    %cst_22 = arith.constant dense<0.000000e+00> : vector<8xf32>
    %73 = vector.multi_reduction <add>, %72, %cst_22 [1] : vector<8x112xf32> to vector<8xf32>
    %74 = vector.shape_cast %73 : vector<8xf32> to vector<8x1xf32>
    %75 = tpu.reciprocal %74 {approx = true} : vector<8x1xf32> -> vector<8x1xf32>
    %76 = arith.mulf %74, %75 : vector<8x1xf32>
    %cst_23 = arith.constant 2.000000e+00 : f32
    %77 = vector.broadcast %cst_23 : f32 to vector<8x1xf32>
    %78 = arith.subf %77, %76 : vector<8x1xf32>
    %79 = arith.mulf %75, %78 : vector<8x1xf32>
    %cst_24 = arith.constant dense<0.000000e+00> : vector<8x128xf32>
    %80 = tpu.matmul %72, %1, %cst_24 {dimension_numbers = #tpu.dot_dimension_numbers<[1], [0], [0], [1], [0, 0, 1, 1], [], []>} : vector<8x112xf32>, vector<112x128xf32>, vector<8x128xf32> -> vector<8x128xf32>
    %cst_25 = arith.constant 5.000000e-01 : f32
    %81 = vector.broadcast %cst_25 : f32 to vector<8x1xf32>
    %82 = arith.mulf %81, %79 : vector<8x1xf32>
    %83 = vector.broadcast %82 : vector<8x1xf32> to vector<8x128xf32>
    %84 = arith.mulf %83, %80 : vector<8x128xf32>
    %85 = arith.addf %84, %0 : vector<8x128xf32>
    %c0_26 = arith.constant 0 : index
    %c0_27 = arith.constant 0 : index
    %86 = vector.load %arg3[%c0_26, %c0_27] : memref<8x128xf32, #tpu.memory_space<vmem>>, vector<8x128xf32>
    tpu.vector_store %arg3[%c0_26, %c0_27], %85 {strides = array<i32>} : memref<8x128xf32, #tpu.memory_space<vmem>>, vector<8x128xf32>,
    return
  }
  func.func @transform_0(%arg0: i32) -> (i32, i32) {
    %c0_i32 = arith.constant 0 : i32
    %c0_i32_0 = arith.constant 0 : i32
    return %arg0, %c0_i32 : i32, i32
  }
  func.func @transform_1(%arg0: i32) -> (i32, i32) {
    %c0_i32 = arith.constant 0 : i32
    %c0_i32_0 = arith.constant 0 : i32
    %c0_i32_1 = arith.constant 0 : i32
    return %c0_i32, %c0_i32_0 : i32, i32
  }
  func.func @transform_2(%arg0: i32) -> (i32, i32) {
    %c0_i32 = arith.constant 0 : i32
    %c0_i32_0 = arith.constant 0 : i32
    return %arg0, %c0_i32 : i32, i32
  }
}

</mosaic_0001>

<llo_original>
// kernel: tpu_custom_call.1
$region0: #{tpu_custom_call.1}
  #allocation0 [shape = 'u32[]', space=smem, size = 0x4, offset = 0x4, fixed_abs, tag = 'smem constant byte address 0x4 - core index']
  #allocation1 [shape = 'u32[144,128]{1,0:T(1,128)}', space=vmem, size = 0x12000, scoped, tag = 'internal scratch']
  %s0 = inlined_call_operand.hbm [shape: f32[8,128], index: 0, kind: input, shape index: {}]
  %s1 = inlined_call_operand.hbm [shape: f32[112,128], index: 1, kind: input, shape index: {}]
  %s2 = inlined_call_operand.hbm [shape: f32[8,128], index: 2, kind: output, shape index: {}]
  %s3 = sld [smem:[#allocation0]]
  $region26: #{tpu_custom_call.1} parent=0
    _
  %s5 = ssub.s32 1, %s3
  %s6 = scalar_select 0, %s5, %s3
  $region1: #{tpu_custom_call.1} parent=0
    #allocation2 [shape = 'u8[4096]{0}', space=vmem, size = 0x1000, scoped, tag = 'input window, operand 0, single buffered']
    #allocation3 [shape = 's32[1]{0}', space=sflag, size = 0x4, scoped, tag = 'scoped memory for tpu_custom_call.1']
    #allocation4 [shape = 's32[1]{0}', space=sflag, size = 0x4, scoped, tag = 'scoped memory for tpu_custom_call.1']
    #allocation5 [shape = 'u8[57344]{0}', space=vmem, size = 0xe000, scoped, tag = 'input window, operand 1, single buffered']
    #allocation6 [shape = 's32[1]{0}', space=sflag, size = 0x4, scoped, tag = 'scoped memory for tpu_custom_call.1']
    #allocation7 [shape = 'u8[4096]{0}', space=vmem, size = 0x1000, scoped, tag = 'output window, operand 0, single buffered']
    %7 = vsyncpa [#allocation3], 0
    %8 = vsyncpa [#allocation6], 0
    %9 = vsyncpa [#allocation4], 0
    // Predicated region
    $region2: #{tpu_custom_call.1} parent=1 // pred_check
      _
    $region3: #{tpu_custom_call.1} parent=1 // pred_check_branch
      %11 = sbr.rel (0) target = $region5
    $region4: #{tpu_custom_call.1} parent=1 // pred_region
      %s13 = ssub.s32 128, 128
      %14 = vsyncadd [#allocation3], %s13
      %s16 = sshll.u32 [#allocation2], 4
      %s17 = int_to_ptr.vmem [resolvable:$true] %s16
      %19 = dma.hbm_to_vmem [thread:$0]  %s0, 128, %s17, [#allocation3]
    $region5: #{tpu_custom_call.1} parent=1 // pred_fallthru
      _
    // Predicated region
    $region6: #{tpu_custom_call.1} parent=1 // pred_check
      _
    $region7: #{tpu_custom_call.1} parent=1 // pred_check_branch
      %21 = sbr.rel (0) target = $region9
    $region8: #{tpu_custom_call.1} parent=1 // pred_region
      %s23 = ssub.s32 1792, 1792
      %24 = vsyncadd [#allocation6], %s23
      %s25 = sshll.u32 [#allocation5], 4
      %s26 = int_to_ptr.vmem [resolvable:$true] %s25
      %31 = dma.hbm_to_vmem [thread:$0]  %s1, 1792, %s26, [#allocation6], 128, 128, 8
    $region9: #{tpu_custom_call.1} parent=1 // pred_fallthru
      _
    // Predicated region
    $region10: #{tpu_custom_call.1} parent=1 // pred_check
      _
    $region11: #{tpu_custom_call.1} parent=1 // pred_check_branch
      %33 = sbr.rel (0) target = $region13
    $region12: #{tpu_custom_call.1} parent=1 // pred_region
      %34 = dma.done [#allocation3], 128
    $region13: #{tpu_custom_call.1} parent=1 // pred_fallthru
      _
    // Predicated region
    $region14: #{tpu_custom_call.1} parent=1 // pred_check
      _
    $region15: #{tpu_custom_call.1} parent=1 // pred_check_branch
      %36 = sbr.rel (0) target = $region17
    $region16: #{tpu_custom_call.1} parent=1 // pred_region
      %37 = dma.done [#allocation6], 1792
    $region17: #{tpu_custom_call.1} parent=1 // pred_fallthru
      _
    %v38 = vld [vmem:[#allocation2] sm:$0xff]
    %v39 = vld [vmem:[#allocation5] sm:$0xff]
    %v40 = vld [vmem:[#allocation5 + $0x8] sm:$0xff]
    %v41 = vld [vmem:[#allocation5 + $0x10] sm:$0xff]
    %v42 = vld [vmem:[#allocation5 + $0x18] sm:$0xff]
    %v43 = vld [vmem:[#allocation5 + $0x20] sm:$0xff]
    %v44 = vld [vmem:[#allocation5 + $0x28] sm:$0xff]
    %v45 = vld [vmem:[#allocation5 + $0x30] sm:$0xff]
    %v46 = vld [vmem:[#allocation5 + $0x38] sm:$0xff]
    %v47 = vld [vmem:[#allocation5 + $0x40] sm:$0xff]
    %v48 = vld [vmem:[#allocation5 + $0x48] sm:$0xff]
    %v49 = vld [vmem:[#allocation5 + $0x50] sm:$0xff]
    %v50 = vld [vmem:[#allocation5 + $0x58] sm:$0xff]
    %v51 = vld [vmem:[#allocation5 + $0x60] sm:$0xff]
    %v52 = vld [vmem:[#allocation5 + $0x68] sm:$0xff]
    %53 = vmatprep.subr.mxu0 0.0
    %54 = vmatpush1.xpose.msra.mxu0 0.0
    %55 = vmatprep.subr.mxu0 0.0
    %56 = vmatpush1.xpose.msra.mxu0 0.0
    %57 = vmatprep.subr.mxu0 0.0
    %58 = vmatpush1.xpose.msra.mxu0 %v52
    %59 = vmatprep.subr.mxu0 0.0
    %60 = vmatpush1.xpose.msra.mxu0 %v51
    %61 = vmatprep.subr.mxu0 0.0
    %62 = vmatpush1.xpose.msra.mxu0 %v50
    %63 = vmatprep.subr.mxu0 0.0
    %64 = vmatpush1.xpose.msra.mxu0 %v49
    %65 = vmatprep.subr.mxu0 0.0
    %66 = vmatpush1.xpose.msra.mxu0 %v48
    %67 = vmatprep.subr.mxu0 0.0
    %68 = vmatpush1.xpose.msra.mxu0 %v47
    %69 = vmatprep.subr.mxu0 0.0
    %70 = vmatpush1.xpose.msra.mxu0 %v46
    %71 = vmatprep.subr.mxu0 0.0
    %72 = vmatpush1.xpose.msra.mxu0 %v45
    %73 = vmatprep.subr.mxu0 0.0
    %74 = vmatpush1.xpose.msra.mxu0 %v44
    %75 = vmatprep.subr.mxu0 0.0
    %76 = vmatpush1.xpose.msra.mxu0 %v43
    %77 = vmatprep.subr.mxu0 0.0
    %78 = vmatpush1.xpose.msra.mxu0 %v42
    %79 = vmatprep.subr.mxu0 0.0
    %80 = vmatpush1.xpose.msra.mxu0 %v41
    %81 = vmatprep.subr.mxu0 0.0
    %82 = vmatpush1.xpose.msra.mxu0 %v40
    %83 = vmatprep.subr.mxu0 0.0
    %84 = vmatpush1.xpose.msra.mxu0 %v39
    %85 = vmatprep.subr.mxu0 0.0
    %86 = vmatpush2.xpose.msra.mxu0 0.0
    %87 = vmatprep.subr.mxu0 0.0
    %88 = vmatpush2.xpose.msra.mxu0 0.0
    %89 = vmatprep.subr.mxu0 0.0
    %90 = vmatpush2.xpose.msra.mxu0 0.0
    %91 = vmatprep.subr.mxu0 0.0
    %92 = vmatpush2.xpose.msra.mxu0 0.0
    %93 = vmatprep.subr.mxu0 0.0
    %94 = vmatpush2.xpose.msra.mxu0 0.0
    %95 = vmatprep.subr.mxu0 0.0
    %96 = vmatpush2.xpose.msra.mxu0 0.0
    %97 = vmatprep.subr.mxu0 0.0
    %98 = vmatpush2.xpose.msra.mxu0 0.0
    %99 = vmatprep.subr.mxu0 0.0
    %100 = vmatpush2.xpose.msra.mxu0 0.0
    %101 = vmatprep.subr.mxu0 0.0
    %102 = vmatpush2.xpose.msra.mxu0 0.0
    %103 = vmatprep.subr.mxu0 0.0
    %104 = vmatpush2.xpose.msra.mxu0 0.0
    %105 = vmatprep.subr.mxu0 0.0
    %106 = vmatpush2.xpose.msra.mxu0 0.0
    %107 = vmatprep.subr.mxu0 0.0
    %108 = vmatpush2.xpose.msra.mxu0 0.0
    %109 = vmatprep.subr.mxu0 0.0
    %110 = vmatpush2.xpose.msra.mxu0 0.0
    %111 = vmatprep.subr.mxu0 0.0
    %112 = vmatpush2.xpose.msra.mxu0 0.0
    %113 = vmatprep.subr.mxu0 0.0
    %114 = vmatpush2.xpose.msra.mxu0 0.0
    %115 = vmatprep.subr.mxu0 0.0
    %116 = vmatpush2.xpose.msra.mxu0 0.0
    %117 = vmatprep.mubr.f32.mxu0 0.0
    %118 = vmatmul.mubr.f32.gmra.mxu0 %v38
    %v119 = vpop.f32.mrf.mxu0
    %v120 = vadd.f32 0.0, %v119
    %v121 = vpop.f32.mrf.mxu0
    %122 = vdwg.mxu0
    %v123 = vlaneseq
    %v124 = vand.u32 %v123, 127
    %vm125 = vcmask 916480
    %v126 = vsel %vm125, %v120, -inf
    %127 = vmax.xlane.f32.xlu0 %v126
    %v128 = vpop.xlane.xlu0 %127
    %vm129 = vcmp.eq.f32.partialorder %v120, %v128
    %v130 = vsel %vm129, %v124, 112
    %v131 = vsel %vm125, %v130, 2147483647
    %v132 = vand.u32 %v131, 65535
    %v133 = vshra.s32 %v131, 16
    %v134 = vcvt.s32.f32 %v132
    %v135 = vcvt.s32.f32 %v133
    %136 = vmin.xlane.f32.xlu0 %v135
    %v137 = vpop.xlane.xlu0 %136
    %vm138 = vcmp.eq.f32.partialorder %v135, %v137
    %v139 = vsel %vm138, %v134, inf
    %140 = vmin.xlane.f32.xlu0 %v139
    %v141 = vpop.xlane.xlu0 %140
    %v142 = vcvt.f32.s32 %v141
    %v143 = vcvt.f32.s32 %v137
    %v144 = vshll.u32 %v143, 16
    %v145 = vadd.s32 %v144, %v142
    %vm146 = vcmp.eq.s32.totalorder %v124, %v145
    %v147 = vsel %vm146, -inf, %v120
    %v148 = vsel %vm125, %v147, -inf
    %149 = vmax.xlane.f32.xlu0 %v148
    %v150 = vpop.xlane.xlu0 %149
    %vm151 = vcmp.eq.f32.partialorder %v147, %v150
    %v152 = vsel %vm151, %v124, 112
    %v153 = vsel %vm125, %v152, 2147483647
    %v154 = vand.u32 %v153, 65535
    %v155 = vshra.s32 %v153, 16
    %v156 = vcvt.s32.f32 %v154
    %v157 = vcvt.s32.f32 %v155
    %158 = vmin.xlane.f32.xlu0 %v157
    %v159 = vpop.xlane.xlu0 %158
    %vm160 = vcmp.eq.f32.partialorder %v157, %v159
    %v161 = vsel %vm160, %v156, inf
    %162 = vmin.xlane.f32.xlu0 %v161
    %v163 = vpop.xlane.xlu0 %162
    %v164 = vcvt.f32.s32 %v163
    %v165 = vcvt.f32.s32 %v159
    %v166 = vshll.u32 %v165, 16
    %v167 = vadd.s32 %v166, %v164
    %vm168 = vcmp.eq.s32.totalorder %v124, %v167
    %vm169 = vmor %vm146, %vm168
    %v170 = vsel %vm168, -inf, %v147
    %v171 = vsel %vm125, %v170, -inf
    %172 = vmax.xlane.f32.xlu0 %v171
    %v173 = vpop.xlane.xlu0 %172
    %vm174 = vcmp.eq.f32.partialorder %v170, %v173
    %v175 = vsel %vm174, %v124, 112
    %v176 = vsel %vm125, %v175, 2147483647
    %v177 = vand.u32 %v176, 65535
    %v178 = vshra.s32 %v176, 16
    %v179 = vcvt.s32.f32 %v177
    %v180 = vcvt.s32.f32 %v178
    %181 = vmin.xlane.f32.xlu0 %v180
    %v182 = vpop.xlane.xlu0 %181
    %vm183 = vcmp.eq.f32.partialorder %v180, %v182
    %v184 = vsel %vm183, %v179, inf
    %185 = vmin.xlane.f32.xlu0 %v184
    %v186 = vpop.xlane.xlu0 %185
    %v187 = vcvt.f32.s32 %v186
    %v188 = vcvt.f32.s32 %v182
    %v189 = vshll.u32 %v188, 16
    %v190 = vadd.s32 %v189, %v187
    %vm191 = vcmp.eq.s32.totalorder %v124, %v190
    %vm192 = vmor %vm169, %vm191
    %v193 = vsel %vm191, -inf, %v170
    %v194 = vsel %vm125, %v193, -inf
    %195 = vmax.xlane.f32.xlu0 %v194
    %v196 = vpop.xlane.xlu0 %195
    %vm197 = vcmp.eq.f32.partialorder %v193, %v196
    %v198 = vsel %vm197, %v124, 112
    %v199 = vsel %vm125, %v198, 2147483647
    %v200 = vand.u32 %v199, 65535
    %v201 = vshra.s32 %v199, 16
    %v202 = vcvt.s32.f32 %v200
    %v203 = vcvt.s32.f32 %v201
    %204 = vmin.xlane.f32.xlu0 %v203
    %v205 = vpop.xlane.xlu0 %204
    %vm206 = vcmp.eq.f32.partialorder %v203, %v205
    %v207 = vsel %vm206, %v202, inf
    %208 = vmin.xlane.f32.xlu0 %v207
    %v209 = vpop.xlane.xlu0 %208
    %v210 = vcvt.f32.s32 %v209
    %v211 = vcvt.f32.s32 %v205
    %v212 = vshll.u32 %v211, 16
    %v213 = vadd.s32 %v212, %v210
    %vm214 = vcmp.eq.s32.totalorder %v124, %v213
    %vm215 = vmor %vm192, %vm214
    %v216 = vsel %vm214, -inf, %v193
    %v217 = vsel %vm125, %v216, -inf
    %218 = vmax.xlane.f32.xlu0 %v217
    %v219 = vpop.xlane.xlu0 %218
    %vm220 = vcmp.eq.f32.partialorder %v216, %v219
    %v221 = vsel %vm220, %v124, 112
    %v222 = vsel %vm125, %v221, 2147483647
    %v223 = vand.u32 %v222, 65535
    %v224 = vshra.s32 %v222, 16
    %v225 = vcvt.s32.f32 %v223
    %v226 = vcvt.s32.f32 %v224
    %227 = vmin.xlane.f32.xlu0 %v226
    %v228 = vpop.xlane.xlu0 %227
    %vm229 = vcmp.eq.f32.partialorder %v226, %v228
    %v230 = vsel %vm229, %v225, inf
    %231 = vmin.xlane.f32.xlu0 %v230
    %v232 = vpop.xlane.xlu0 %231
    %v233 = vcvt.f32.s32 %v232
    %v234 = vcvt.f32.s32 %v228
    %v235 = vshll.u32 %v234, 16
    %v236 = vadd.s32 %v235, %v233
    %vm237 = vcmp.eq.s32.totalorder %v124, %v236
    %vm238 = vmor %vm215, %vm237
    %v239 = vsub.f32 %v120, %v128
    %v240 = vmul.f32 %v239, 1.442695
    %v241 = vpow.pop %v240
    %v242 = vsel %vm238, %v241, 0.0
    %v243 = vsel %vm125, %v242, 0.0
    %244 = vadd.xlane.f32.xlu0 %v243
    %v245 = vpop.xlane.xlu0 %244
    %v246 = vrcp.pop %v245
    %v247 = vmul.f32 %v245, %v246
    %v248 = vsub.f32 2.0, %v247
    %v249 = vmul.f32 %v246, %v248
    %v251 = vsel %vm125, %v242, 0
    %253 = vmatprep.subr.mxu0 0.0
    %254 = vmatpush1.msra.mxu0 0.0
    %255 = vmatprep.subr.mxu0 0.0
    %256 = vmatpush1.msra.mxu0 0.0
    %257 = vmatprep.subr.mxu0 0.0
    %258 = vmatpush1.msra.mxu0 %v52
    %259 = vmatprep.subr.mxu0 0.0
    %260 = vmatpush1.msra.mxu0 %v51
    %261 = vmatprep.subr.mxu0 0.0
    %262 = vmatpush1.msra.mxu0 %v50
    %263 = vmatprep.subr.mxu0 0.0
    %264 = vmatpush1.msra.mxu0 %v49
    %265 = vmatprep.subr.mxu0 0.0
    %266 = vmatpush1.msra.mxu0 %v48
    %267 = vmatprep.subr.mxu0 0.0
    %268 = vmatpush1.msra.mxu0 %v47
    %269 = vmatprep.subr.mxu0 0.0
    %270 = vmatpush1.msra.mxu0 %v46
    %271 = vmatprep.subr.mxu0 0.0
    %272 = vmatpush1.msra.mxu0 %v45
    %273 = vmatprep.subr.mxu0 0.0
    %274 = vmatpush1.msra.mxu0 %v44
    %275 = vmatprep.subr.mxu0 0.0
    %276 = vmatpush1.msra.mxu0 %v43
    %277 = vmatprep.subr.mxu0 0.0
    %278 = vmatpush1.msra.mxu0 %v42
    %279 = vmatprep.subr.mxu0 0.0
    %280 = vmatpush1.msra.mxu0 %v41
    %281 = vmatprep.subr.mxu0 0.0
    %282 = vmatpush1.msra.mxu0 %v40
    %283 = vmatprep.subr.mxu0 0.0
    %284 = vmatpush1.msra.mxu0 %v39
    %285 = vmatprep.subr.mxu0 0.0
    %286 = vmatpush2.msra.mxu0 0.0
    %287 = vmatprep.subr.mxu0 0.0
    %288 = vmatpush2.msra.mxu0 0.0
    %289 = vmatprep.subr.mxu0 0.0
    %290 = vmatpush2.msra.mxu0 0.0
    %291 = vmatprep.subr.mxu0 0.0
    %292 = vmatpush2.msra.mxu0 0.0
    %293 = vmatprep.subr.mxu0 0.0
    %294 = vmatpush2.msra.mxu0 0.0
    %295 = vmatprep.subr.mxu0 0.0
    %296 = vmatpush2.msra.mxu0 0.0
    %297 = vmatprep.subr.mxu0 0.0
    %298 = vmatpush2.msra.mxu0 0.0
    %299 = vmatprep.subr.mxu0 0.0
    %300 = vmatpush2.msra.mxu0 0.0
    %301 = vmatprep.subr.mxu0 0.0
    %302 = vmatpush2.msra.mxu0 0.0
    %303 = vmatprep.subr.mxu0 0.0
    %304 = vmatpush2.msra.mxu0 0.0
    %305 = vmatprep.subr.mxu0 0.0
    %306 = vmatpush2.msra.mxu0 0.0
    %307 = vmatprep.subr.mxu0 0.0
    %308 = vmatpush2.msra.mxu0 0.0
    %309 = vmatprep.subr.mxu0 0.0
    %310 = vmatpush2.msra.mxu0 0.0
    %311 = vmatprep.subr.mxu0 0.0
    %312 = vmatpush2.msra.mxu0 0.0
    %313 = vmatprep.subr.mxu0 0.0
    %314 = vmatpush2.msra.mxu0 0.0
    %315 = vmatprep.subr.mxu0 0.0
    %316 = vmatpush2.msra.mxu0 0.0
    %317 = vmatprep.mubr.f32.mxu0 0.0
    %318 = vmatmul.mubr.f32.gmra.mxu0 %v251
    %v319 = vpop.f32.mrf.mxu0
    %v320 = vadd.f32 0.0, %v319
    %v321 = vpop.f32.mrf.mxu0
    %322 = vdwg.mxu0
    %v323 = vmul.f32 %v249, 0.5
    %v324 = vmul.f32 %v323, %v320
    %v325 = vadd.f32 %v324, %v38
    %326 = vst [vmem:[#allocation7] sm:$0xff] %v325
    // Predicated region
    $region18: #{tpu_custom_call.1} parent=1 // pred_check
      _
    $region19: #{tpu_custom_call.1} parent=1 // pred_check_branch
      %328 = sbr.rel (0) target = $region21
    $region20: #{tpu_custom_call.1} parent=1 // pred_region
      %s330 = ssub.s32 128, 128
      %331 = vsyncadd [#allocation4], %s330
      %s333 = sshll.u32 [#allocation7], 4
      %s334 = int_to_ptr.vmem [resolvable:$true] %s333
      %336 = dma.vmem_to_hbm [thread:$0]  %s334, 128, %s2, [#allocation4]
    $region21: #{tpu_custom_call.1} parent=1 // pred_fallthru
      _
    // Predicated region
    $region22: #{tpu_custom_call.1} parent=1 // pred_check
      _
    $region23: #{tpu_custom_call.1} parent=1 // pred_check_branch
      %338 = sbr.rel (0) target = $region25
    $region24: #{tpu_custom_call.1} parent=1 // pred_region
      %339 = dma.done [#allocation4], 128
    $region25: #{tpu_custom_call.1} parent=1 // pred_fallthru
      _
    %340 = vsyncpa [#allocation3], 1
    %341 = vsyncpa [#allocation6], 1
    %342 = vsyncpa [#allocation4], 1

</llo_original>
